<compile_context>
chip_gen: v6e
topology: v6e:2x2x1
jax: 0.10.0
libtpu: 0.0.40
codegen_flags: <defaults>
</compile_context>

<pallas_src>
import functools

import jax
import jax.numpy as jnp
from jax.experimental import pallas as pl
from jax.experimental.pallas import tpu as pltpu


def _round_up(x, m):
    return (x + m - 1) // m * m


def _make_tree_loss_kernel(n_nodes, n_classes, batch_tile, compute_bal):
    nc = n_nodes * n_classes

    def kernel(y_ref, path_ref, logit_ref, *out_refs):
        loss1_ref = out_refs[0]
        step = pl.program_id(0)

        @pl.when(step == 0)
        def _init():
            loss1_ref[...] = jnp.zeros_like(loss1_ref)
            if compute_bal:
                out_refs[1][...] = jnp.zeros_like(out_refs[1])

        # Storage dtype (e.g. bf16) on the DMA side; f32 for compute/accumulate.
        logit = logit_ref[...].astype(jnp.float32)   # (TB, N*C), lane-dense
        path = path_ref[...].astype(jnp.float32)     # (TB, N)
        y = y_ref[...]                               # (TB, 1) int32

        # lane j encodes (node = j // C, class = j % C).  True-class mask built
        # with N static equality tests (avoids vector integer div/mod; fine for
        # tree sizes, O(N) compares per tile).
        lane = jax.lax.broadcasted_iota(jnp.int32, (batch_tile, nc), 1)
        mask = lane == y
        for n in range(1, n_nodes):
            mask = jnp.logical_or(mask, lane == y + n * n_classes)

        # seg[j, n] = 1.0 iff lane j belongs to node n (and its transpose),
        # built from iota range tests.  Used as 0/1 MXU operands for the
        # per-node reduction / broadcasts, keeping the wide tensors lane-dense.
        jj = jax.lax.broadcasted_iota(jnp.int32, (nc, n_nodes), 0)
        nn = jax.lax.broadcasted_iota(jnp.int32, (nc, n_nodes), 1)
        seg = ((jj >= nn * n_classes) & (jj < (nn + 1) * n_classes)).astype(jnp.float32)
        jjt = jax.lax.broadcasted_iota(jnp.int32, (n_nodes, nc), 1)
        nnt = jax.lax.broadcasted_iota(jnp.int32, (n_nodes, nc), 0)
        segt = ((jjt >= nnt * n_classes) & (jjt < (nnt + 1) * n_classes)).astype(jnp.float32)

        dot = functools.partial(jnp.dot, preferred_element_type=jnp.float32)

        masked = jnp.where(mask, logit, 0.0)            # keep only logit[b, n, y[b]]
        p_true_n = dot(masked, seg)                     # (TB, N)   = logit[b, n, y[b]]
        p_true = dot(p_true_n, segt)                    # (TB, N*C) broadcast over classes
        hinge = jnp.maximum(logit - p_true + 1.0, 0.0)  # (TB, N*C) hinge terms
        path_b = dot(path, segt)                        # (TB, N*C) path[b, node(j)]

        # sum_b sum_n path[b, n] * sum_c hinge[b, n, c]  over this batch tile
        loss1_ref[...] += jnp.reshape(jnp.sum(hinge * path_b), (1, 1))
        if compute_bal:
            out_refs[1][...] += jnp.sum(path, axis=0, keepdims=True)  # (1, N)

    return kernel


def tree_loss(path, logit, y, lamda=0.0, *, batch_tile=None):
    """Pallas-backed TreeLoss.forward given model outputs path/logit and labels y.

    path  : (B, N)    float (f32 or bf16) leaf-routing probabilities (rows sum to 1)
    logit : (B, N, C) float (f32 or bf16) per-node class scores
    y     : (B,)      int   hard labels (the y.ndim == 1 branch of to_cls_loss)
    """
    B, N, C = logit.shape
    NC = N * C
    compute_bal = lamda > 0

    # Lane-dense layout for the heavy tensor (free reshape of contiguous HBM data).
    logit2d = logit.reshape(B, NC)
    y2d = y.reshape(B, 1).astype(jnp.int32)

    # Batch tile: largest multiple of 8 keeping the logit tile <= ~2 MiB so the
    # double-buffered pipeline + temporaries fit comfortably inside a 32 MiB
    # scoped-VMEM limit on all of v5e / v6e / v7x (v7x: 64 MiB physical).
    itemsize = jnp.dtype(logit.dtype).itemsize
    row_bytes = NC * itemsize + N * jnp.dtype(path.dtype).itemsize + 4
    if batch_tile is None:
        tb = (2 * 1024 * 1024) // max(row_bytes, 1)
        tb = int(max(8, min(512, (tb // 8) * 8)))
    else:
        tb = _round_up(int(batch_tile), 8)
    tb = min(tb, _round_up(B, 8))
    b_pad = _round_up(B, tb)

    if b_pad != B:
        pad = b_pad - B
        logit2d = jnp.pad(logit2d, ((0, pad), (0, 0)))
        path = jnp.pad(path, ((0, pad), (0, 0)))   # zero path rows contribute nothing
        y2d = jnp.pad(y2d, ((0, pad), (0, 0)))

    grid = (b_pad // tb,)
    kernel = _make_tree_loss_kernel(N, C, tb, compute_bal)

    out_shape = [jax.ShapeDtypeStruct((1, 1), jnp.float32)]
    out_specs = [pl.BlockSpec((1, 1), lambda i: (0, 0))]
    if compute_bal:
        out_shape.append(jax.ShapeDtypeStruct((1, N), jnp.float32))
        out_specs.append(pl.BlockSpec((1, N), lambda i: (0, 0)))

    in_specs = [
        pl.BlockSpec((tb, 1), lambda i: (i, 0)),    # y (hard labels)
        pl.BlockSpec((tb, N), lambda i: (i, 0)),    # path
        pl.BlockSpec((tb, NC), lambda i: (i, 0)),   # logit, lane-dense
    ]

    flops = int(b_pad * (6 * N * NC + 8 * NC))
    bytes_accessed = int(b_pad * row_bytes + (1 + N) * 4)

    outs = pl.pallas_call(
        kernel,
        out_shape=tuple(out_shape),
        grid=grid,
        in_specs=in_specs,
        out_specs=tuple(out_specs),
        compiler_params=pltpu.CompilerParams(
            dimension_semantics=("arbitrary",),      # batch axis accumulates into outputs
            vmem_limit_bytes=32 * 1024 * 1024,
        ),
        cost_estimate=pl.CostEstimate(
            flops=flops, transcendentals=0, bytes_accessed=bytes_accessed),
    )(y2d, path, logit2d)

    loss1 = outs[0][0, 0] / B                        # mean over the *real* batch size
    if compute_bal:
        mean_path = outs[1][0] / B
        loss2 = lamda * jnp.sum(mean_path * jnp.log(mean_path))
    else:
        loss2 = jnp.zeros(1, dtype=jnp.float32)      # mirrors torch.zeros(1)
    return loss1, loss2


def ref_tree_loss(path, logit, y, lamda):
    """Pure-JAX reference mirroring the PyTorch TreeLoss (hinge, hard labels)."""
    path = path.astype(jnp.float32)
    logit = logit.astype(jnp.float32)
    B, N, C = logit.shape
    p = logit.reshape(B * N, C)
    yy = jnp.broadcast_to(y[:, None], (B, N)).reshape(-1)
    p_true = p[jnp.arange(B * N), yy][:, None]
    tq = jnp.sum(jnp.maximum(p - p_true + 1.0, 0.0), axis=1).reshape(B, N)
    loss1 = jnp.mean(jnp.sum(path * tq, axis=1))
    if lamda > 0:
        mp = jnp.mean(path, axis=0)
        loss2 = lamda * jnp.sum(mp * jnp.log(mp))
    else:
        loss2 = jnp.zeros(1, dtype=jnp.float32)
    return loss1, loss2


if __name__ == "__main__":
    key = jax.random.PRNGKey(0)

    def make_data(k, B, D, N, C):
        k1, k2, k3, k4 = jax.random.split(k, 4)
        x = jax.random.normal(k1, (B, D), jnp.float32)
        Wp = jax.random.normal(k2, (D, N), jnp.float32) * 0.1
        Wl = jax.random.normal(k3, (D, N, C), jnp.float32) * 0.1
        yv = jax.random.randint(k4, (B,), 0, C)
        path = jax.nn.softmax(x @ Wp, axis=1)           # (B, N), rows sum to 1
        logit = jnp.einsum("bd,dnc->bnc", x, Wl)        # (B, N, C)
        return path, logit, yv

    D, N, C = 32, 8, 16
    k1, k2, k3 = jax.random.split(key, 3)

    # 1) bf16 model outputs (no f32 up-cast on the HBM side), lamda > 0.
    path, logit, y = make_data(k1, 8, D, N, C)
    path_bf, logit_bf = path.astype(jnp.bfloat16), logit.astype(jnp.bfloat16)
    l1, l2 = tree_loss(path_bf, logit_bf, y, lamda=0.5)
    jax.block_until_ready((l1, l2))
    r1, r2 = ref_tree_loss(path_bf, logit_bf, y, 0.5)
    assert jnp.allclose(l1, r1, atol=1e-4, rtol=1e-4), (l1, r1)
    assert jnp.allclose(l2, r2, atol=1e-4, rtol=1e-4), (l2, r2)

    # 2) B not a multiple of the tile (padding) + multi-step grid + lamda == 0
    #    (the balance output and its compute are skipped entirely).
    path, logit, y = make_data(k2, 37, D, N, C)
    path_bf, logit_bf = path.astype(jnp.bfloat16), logit.astype(jnp.bfloat16)
    l1, l2 = tree_loss(path_bf, logit_bf, y, lamda=0.0, batch_tile=8)
    jax.block_until_ready((l1, l2))
    r1, r2 = ref_tree_loss(path_bf, logit_bf, y, 0.0)
    assert jnp.allclose(l1, r1, atol=1e-4, rtol=1e-4), (l1, r1)
    assert jnp.allclose(l2, r2), (l2, r2)

    # 3) float32 inputs (loose tolerance: for raw-f32 operands the 0/1 MXU
    #    reductions may run at reduced matmul precision on some generations).
    path, logit, y = make_data(k3, 16, D, N, C)
    l1, l2 = tree_loss(path, logit, y, lamda=0.3, batch_tile=8)
    jax.block_until_ready((l1, l2))
    r1, r2 = ref_tree_loss(path, logit, y, 0.3)
    assert jnp.allclose(l1, r1, atol=2e-2, rtol=2e-2), (l1, r1)
    assert jnp.allclose(l2, r2, atol=1e-4, rtol=1e-4), (l2, r2)

    print("KERNEL_OK")
</pallas_src>

<mosaic_0001>
module attributes {stable_mosaic.version = 11 : i64} {
  func.func @kernel(%arg0: i32, %arg1: memref<8x1xi32, #tpu.memory_space<vmem>>, %arg2: memref<8x8xbf16, #tpu.memory_space<vmem>>, %arg3: memref<8x128xbf16, #tpu.memory_space<vmem>>, %arg4: memref<1x1xf32, #tpu.memory_space<vmem>>, %arg5: memref<1x8xf32, #tpu.memory_space<vmem>>) attributes {dimension_semantics = [#tpu.dimension_semantics<arbitrary>], iteration_bounds = array<i64: 1>, scalar_prefetch = 0 : i64, scratch_operands = 0 : i64, tpu.core_type = #tpu.core_type<tc>, window_params = [{transform_indices = @transform_0, window_bounds = array<i64: 8, 1>}, {transform_indices = @transform_1, window_bounds = array<i64: 8, 8>}, {transform_indices = @transform_2, window_bounds = array<i64: 8, 128>}, {pipeline_mode = #tpu.pipeline_mode<synchronous>, transform_indices = @transform_3, window_bounds = array<i64: 1, 1>}, {pipeline_mode = #tpu.pipeline_mode<synchronous>, transform_indices = @transform_4, window_bounds = array<i64: 1, 8>}]} {
    %c0_i32 = arith.constant 0 : i32
    %0 = arith.cmpi eq, %arg0, %c0_i32 : i32
    %1 = arith.extui %0 : i1 to i32
    %c0_i32_0 = arith.constant 0 : i32
    %2 = arith.cmpi ne, %1, %c0_i32_0 : i32
    scf.if %2 {
      %cst_26 = arith.constant 0.000000e+00 : f32
      %96 = vector.broadcast %cst_26 : f32 to vector<1x1xf32>
      %c0_27 = arith.constant 0 : index
      %c0_28 = arith.constant 0 : index
      %97 = vector.load %arg4[%c0_27, %c0_28] : memref<1x1xf32, #tpu.memory_space<vmem>>, vector<1x1xf32>
      tpu.vector_store %arg4[%c0_27, %c0_28], %96 {strides = array<i32>} : memref<1x1xf32, #tpu.memory_space<vmem>>, vector<1x1xf32>,
      %cst_29 = arith.constant 0.000000e+00 : f32
      %98 = vector.broadcast %cst_29 : f32 to vector<1x8xf32>
      %c0_30 = arith.constant 0 : index
      %c0_31 = arith.constant 0 : index
      %99 = vector.load %arg5[%c0_30, %c0_31] : memref<1x8xf32, #tpu.memory_space<vmem>>, vector<1x8xf32>
      tpu.vector_store %arg5[%c0_30, %c0_31], %98 {strides = array<i32>} : memref<1x8xf32, #tpu.memory_space<vmem>>, vector<1x8xf32>,
    } else {
    }
    %c0 = arith.constant 0 : index
    %c0_1 = arith.constant 0 : index
    %3 = vector.load %arg3[%c0, %c0_1] : memref<8x128xbf16, #tpu.memory_space<vmem>>, vector<8x128xbf16>
    %4 = arith.extf %3 : vector<8x128xbf16> to vector<8x128xf32>
    %c0_2 = arith.constant 0 : index
    %c0_3 = arith.constant 0 : index
    %5 = vector.load %arg2[%c0_2, %c0_3] : memref<8x8xbf16, #tpu.memory_space<vmem>>, vector<8x8xbf16>
    %6 = arith.extf %5 : vector<8x8xbf16> to vector<8x8xf32>
    %c0_4 = arith.constant 0 : index
    %c0_5 = arith.constant 0 : index
    %7 = vector.load %arg1[%c0_4, %c0_5] : memref<8x1xi32, #tpu.memory_space<vmem>>, vector<8x1xi32>
    %8 = tpu.iota {dimensions = array<i32: 1>} : vector<8x128xi32>
    %9 = vector.broadcast %7 : vector<8x1xi32> to vector<8x128xi32>
    %10 = arith.cmpi eq, %8, %9 : vector<8x128xi32>
    %c16_i32 = arith.constant 16 : i32
    %11 = vector.broadcast %c16_i32 : i32 to vector<8x1xi32>
    %12 = arith.addi %7, %11 : vector<8x1xi32>
    %13 = vector.broadcast %12 : vector<8x1xi32> to vector<8x128xi32>
    %14 = arith.cmpi eq, %8, %13 : vector<8x128xi32>
    %15 = arith.ori %10, %14 : vector<8x128xi1>
    %c32_i32 = arith.constant 32 : i32
    %16 = vector.broadcast %c32_i32 : i32 to vector<8x1xi32>
    %17 = arith.addi %7, %16 : vector<8x1xi32>
    %18 = vector.broadcast %17 : vector<8x1xi32> to vector<8x128xi32>
    %19 = arith.cmpi eq, %8, %18 : vector<8x128xi32>
    %20 = arith.ori %15, %19 : vector<8x128xi1>
    %c48_i32 = arith.constant 48 : i32
    %21 = vector.broadcast %c48_i32 : i32 to vector<8x1xi32>
    %22 = arith.addi %7, %21 : vector<8x1xi32>
    %23 = vector.broadcast %22 : vector<8x1xi32> to vector<8x128xi32>
    %24 = arith.cmpi eq, %8, %23 : vector<8x128xi32>
    %25 = arith.ori %20, %24 : vector<8x128xi1>
    %c64_i32 = arith.constant 64 : i32
    %26 = vector.broadcast %c64_i32 : i32 to vector<8x1xi32>
    %27 = arith.addi %7, %26 : vector<8x1xi32>
    %28 = vector.broadcast %27 : vector<8x1xi32> to vector<8x128xi32>
    %29 = arith.cmpi eq, %8, %28 : vector<8x128xi32>
    %30 = arith.ori %25, %29 : vector<8x128xi1>
    %c80_i32 = arith.constant 80 : i32
    %31 = vector.broadcast %c80_i32 : i32 to vector<8x1xi32>
    %32 = arith.addi %7, %31 : vector<8x1xi32>
    %33 = vector.broadcast %32 : vector<8x1xi32> to vector<8x128xi32>
    %34 = arith.cmpi eq, %8, %33 : vector<8x128xi32>
    %35 = arith.ori %30, %34 : vector<8x128xi1>
    %c96_i32 = arith.constant 96 : i32
    %36 = vector.broadcast %c96_i32 : i32 to vector<8x1xi32>
    %37 = arith.addi %7, %36 : vector<8x1xi32>
    %38 = vector.broadcast %37 : vector<8x1xi32> to vector<8x128xi32>
    %39 = arith.cmpi eq, %8, %38 : vector<8x128xi32>
    %40 = arith.ori %35, %39 : vector<8x128xi1>
    %c112_i32 = arith.constant 112 : i32
    %41 = vector.broadcast %c112_i32 : i32 to vector<8x1xi32>
    %42 = arith.addi %7, %41 : vector<8x1xi32>
    %43 = vector.broadcast %42 : vector<8x1xi32> to vector<8x128xi32>
    %44 = arith.cmpi eq, %8, %43 : vector<8x128xi32>
    %45 = arith.ori %40, %44 : vector<8x128xi1>
    %46 = tpu.iota {dimensions = array<i32: 0>} : vector<128x8xi32>
    %47 = tpu.iota {dimensions = array<i32: 1>} : vector<128x8xi32>
    %c16_i32_6 = arith.constant 16 : i32
    %48 = vector.broadcast %c16_i32_6 : i32 to vector<128x8xi32>
    %49 = arith.muli %47, %48 : vector<128x8xi32>
    %50 = arith.cmpi sge, %46, %49 : vector<128x8xi32>
    %c1_i32 = arith.constant 1 : i32
    %51 = vector.broadcast %c1_i32 : i32 to vector<128x8xi32>
    %52 = arith.addi %47, %51 : vector<128x8xi32>
    %c16_i32_7 = arith.constant 16 : i32
    %53 = vector.broadcast %c16_i32_7 : i32 to vector<128x8xi32>
    %54 = arith.muli %52, %53 : vector<128x8xi32>
    %55 = arith.cmpi slt, %46, %54 : vector<128x8xi32>
    %56 = arith.andi %50, %55 : vector<128x8xi1>
    %57 = arith.extui %56 : vector<128x8xi1> to vector<128x8xi32>
    %58 = arith.sitofp %57 : vector<128x8xi32> to vector<128x8xf32>
    %59 = tpu.iota {dimensions = array<i32: 1>} : vector<8x128xi32>
    %60 = tpu.iota {dimensions = array<i32: 0>} : vector<8x128xi32>
    %c16_i32_8 = arith.constant 16 : i32
    %61 = vector.broadcast %c16_i32_8 : i32 to vector<8x128xi32>
    %62 = arith.muli %60, %61 : vector<8x128xi32>
    %63 = arith.cmpi sge, %59, %62 : vector<8x128xi32>
    %c1_i32_9 = arith.constant 1 : i32
    %64 = vector.broadcast %c1_i32_9 : i32 to vector<8x128xi32>
    %65 = arith.addi %60, %64 : vector<8x128xi32>
    %c16_i32_10 = arith.constant 16 : i32
    %66 = vector.broadcast %c16_i32_10 : i32 to vector<8x128xi32>
    %67 = arith.muli %65, %66 : vector<8x128xi32>
    %68 = arith.cmpi slt, %59, %67 : vector<8x128xi32>
    %69 = arith.andi %63, %68 : vector<8x128xi1>
    %70 = arith.extui %69 : vector<8x128xi1> to vector<8x128xi32>
    %71 = arith.sitofp %70 : vector<8x128xi32> to vector<8x128xf32>
    %cst = arith.constant 0.000000e+00 : f32
    %72 = vector.broadcast %cst : f32 to vector<8x128xf32>
    %73 = arith.select %45, %4, %72 : vector<8x128xi1>, vector<8x128xf32>
    %cst_11 = arith.constant dense<0.000000e+00> : vector<8x8xf32>
    %74 = tpu.matmul %73, %58, %cst_11 {dimension_numbers = #tpu.dot_dimension_numbers<[1], [0], [0], [1], [0, 0, 1, 1], [], []>} : vector<8x128xf32>, vector<128x8xf32>, vector<8x8xf32> -> vector<8x8xf32>
    %cst_12 = arith.constant dense<0.000000e+00> : vector<8x128xf32>
    %75 = tpu.matmul %74, %71, %cst_12 {dimension_numbers = #tpu.dot_dimension_numbers<[1], [0], [0], [1], [0, 0, 1, 1], [], []>} : vector<8x8xf32>, vector<8x128xf32>, vector<8x128xf32> -> vector<8x128xf32>
    %76 = arith.subf %4, %75 : vector<8x128xf32>
    %cst_13 = arith.constant 1.000000e+00 : f32
    %77 = vector.broadcast %cst_13 : f32 to vector<8x128xf32>
    %78 = arith.addf %76, %77 : vector<8x128xf32>
    %cst_14 = arith.constant 0.000000e+00 : f32
    %79 = vector.broadcast %cst_14 : f32 to vector<8x128xf32>
    %80 = arith.maximumf %78, %79 : vector<8x128xf32>
    %cst_15 = arith.constant dense<0.000000e+00> : vector<8x128xf32>
    %81 = tpu.matmul %6, %71, %cst_15 {dimension_numbers = #tpu.dot_dimension_numbers<[1], [0], [0], [1], [0, 0, 1, 1], [], []>} : vector<8x8xf32>, vector<8x128xf32>, vector<8x128xf32> -> vector<8x128xf32>
    %c0_16 = arith.constant 0 : index
    %c0_17 = arith.constant 0 : index
    %82 = vector.load %arg4[%c0_16, %c0_17] : memref<1x1xf32, #tpu.memory_space<vmem>>, vector<1x1xf32>
    %83 = arith.mulf %80, %81 : vector<8x128xf32>
    %84 = vector.shape_cast %83 : vector<8x128xf32> to vector<1x8x128xf32>
    %cst_18 = arith.constant dense<0.000000e+00> : vector<1xf32>
    %85 = vector.multi_reduction <add>, %84, %cst_18 [1, 2] : vector<1x8x128xf32> to vector<1xf32>
    %86 = vector.shape_cast %85 : vector<1xf32> to vector<1x1x1xf32>
    %87 = vector.extract %86[0, 0, 0] : f32 from vector<1x1x1xf32>
    %88 = vector.broadcast %87 : f32 to vector<1x1xf32>
    %89 = arith.addf %82, %88 : vector<1x1xf32>
    %c0_19 = arith.constant 0 : index
    %c0_20 = arith.constant 0 : index
    %90 = vector.load %arg4[%c0_19, %c0_20] : memref<1x1xf32, #tpu.memory_space<vmem>>, vector<1x1xf32>
    tpu.vector_store %arg4[%c0_19, %c0_20], %89 {strides = array<i32>} : memref<1x1xf32, #tpu.memory_space<vmem>>, vector<1x1xf32>,
    %c0_21 = arith.constant 0 : index
    %c0_22 = arith.constant 0 : index
    %91 = vector.load %arg5[%c0_21, %c0_22] : memref<1x8xf32, #tpu.memory_space<vmem>>, vector<1x8xf32>
    %cst_23 = arith.constant dense<0.000000e+00> : vector<8xf32>
    %92 = vector.multi_reduction <add>, %6, %cst_23 [0] : vector<8x8xf32> to vector<8xf32>
    %93 = vector.shape_cast %92 : vector<8xf32> to vector<1x8xf32>
    %94 = arith.addf %91, %93 : vector<1x8xf32>
    %c0_24 = arith.constant 0 : index
    %c0_25 = arith.constant 0 : index
    %95 = vector.load %arg5[%c0_24, %c0_25] : memref<1x8xf32, #tpu.memory_space<vmem>>, vector<1x8xf32>
    tpu.vector_store %arg5[%c0_24, %c0_25], %94 {strides = array<i32>} : memref<1x8xf32, #tpu.memory_space<vmem>>, vector<1x8xf32>,
    return
  }
  func.func @transform_0(%arg0: i32) -> (i32, i32) {
    %c0_i32 = arith.constant 0 : i32
    %c0_i32_0 = arith.constant 0 : i32
    return %arg0, %c0_i32 : i32, i32
  }
  func.func @transform_1(%arg0: i32) -> (i32, i32) {
    %c0_i32 = arith.constant 0 : i32
    %c0_i32_0 = arith.constant 0 : i32
    return %arg0, %c0_i32 : i32, i32
  }
  func.func @transform_2(%arg0: i32) -> (i32, i32) {
    %c0_i32 = arith.constant 0 : i32
    %c0_i32_0 = arith.constant 0 : i32
    return %arg0, %c0_i32 : i32, i32
  }
  func.func @transform_3(%arg0: i32) -> (i32, i32) {
    %c0_i32 = arith.constant 0 : i32
    %c0_i32_0 = arith.constant 0 : i32
    %c0_i32_1 = arith.constant 0 : i32
    return %c0_i32, %c0_i32_0 : i32, i32
  }
  func.func @transform_4(%arg0: i32) -> (i32, i32) {
    %c0_i32 = arith.constant 0 : i32
    %c0_i32_0 = arith.constant 0 : i32
    %c0_i32_1 = arith.constant 0 : i32
    return %c0_i32, %c0_i32_0 : i32, i32
  }
}

</mosaic_0001>

<llo_original>
// kernel: tpu_custom_call.1
$region0: #{tpu_custom_call.1}
  #allocation0 [shape = 'u32[]', space=smem, size = 0x4, offset = 0x4, fixed_abs, tag = 'smem constant byte address 0x4 - core index']
  #allocation1 [shape = 'u32[144,128]{1,0:T(1,128)}', space=vmem, size = 0x12000, scoped, tag = 'internal scratch']
  %s0 = inlined_call_operand.vmem [shape: s32[8,1], index: 0, kind: input, shape index: {}]
  %s1 = inlined_call_operand.vmem [shape: bf16[8,8], index: 1, kind: input, shape index: {}]
  %s2 = inlined_call_operand.vmem [shape: bf16[8,128], index: 2, kind: input, shape index: {}]
  %s3 = inlined_call_operand.hbm [shape: f32[1,1], index: 3, kind: output, shape index: {0}]
  %s4 = inlined_call_operand.hbm [shape: f32[1,8], index: 4, kind: output, shape index: {1}]
  %5 = xla_tuple %s3, %s4
  %s6 = sld [smem:[#allocation0]]
  $region34: #{tpu_custom_call.1} parent=0
    _
  %s8 = ssub.s32 1, %s6
  %s9 = scalar_select 0, %s8, %s6
  $region1: #{tpu_custom_call.1} parent=0
    #allocation2 [shape = 'u8[512]{0}', space=vmem, size = 0x400, scoped, tag = 'output window, operand 0, single buffered']
    #allocation3 [shape = 's32[1]{0}', space=sflag, size = 0x4, scoped, tag = 'scoped memory for tpu_custom_call.1']
    #allocation4 [shape = 'u8[512]{0}', space=vmem, size = 0x400, scoped, tag = 'output window, operand 1, single buffered']
    #allocation5 [shape = 's32[1]{0}', space=sflag, size = 0x4, scoped, tag = 'scoped memory for tpu_custom_call.1']
    %10 = vsyncpa [#allocation3], 0
    %11 = vsyncpa [#allocation5], 0
    // Predicated region
    $region2: #{tpu_custom_call.1} parent=1 // pred_check
      _
    $region3: #{tpu_custom_call.1} parent=1 // pred_check_branch
      %13 = sbr.rel (0) target = $region5
    $region4: #{tpu_custom_call.1} parent=1 // pred_region
      _
    $region5: #{tpu_custom_call.1} parent=1 // pred_fallthru
      _
    // Predicated region
    $region6: #{tpu_custom_call.1} parent=1 // pred_check
      _
    $region7: #{tpu_custom_call.1} parent=1 // pred_check_branch
      %15 = sbr.rel (0) target = $region9
    $region8: #{tpu_custom_call.1} parent=1 // pred_region
      _
    $region9: #{tpu_custom_call.1} parent=1 // pred_fallthru
      _
    // Predicated region
    $region10: #{tpu_custom_call.1} parent=1 // pred_check
      _
    $region11: #{tpu_custom_call.1} parent=1 // pred_check_branch
      %17 = sbr.rel (0) target = $region13
    $region12: #{tpu_custom_call.1} parent=1 // pred_region
      _
    $region13: #{tpu_custom_call.1} parent=1 // pred_fallthru
      _
    %p18 = scmp.eq.s32.totalorder 0, 0
    // Predicated region
    $region14: #{tpu_custom_call.1} parent=1 // pred_check
      %p19 = pneg %p18
    $region15: #{tpu_custom_call.1} parent=1 // pred_check_branch
      %21 = sbr.rel (%p19) target = $region17
    $region16: #{tpu_custom_call.1} parent=1 // pred_region
      %vm22 = vcmask 0
      %23 = vst.msk [vmem:[#allocation2] sm:$0x1] %vm22, 0.0
      %vm24 = vcmask 57344
      %25 = vst.msk [vmem:[#allocation4] sm:$0x1] %vm24, 0.0
    $region17: #{tpu_custom_call.1} parent=1 // pred_fallthru
      _
    %v26 = vld [vmem:[%s2] sm:$0xf]
    %v27 = vunpack.c.l.bf16 %v26
    %v28 = vld [vmem:[%s1] sm:$0xf]
    %v29 = vunpack.c.l.bf16 %v28
    %v30 = vld [vmem:[%s0] sm:$0xff]
    %v31 = vlaneseq
    %v32 = vand.u32 %v31, 127
    %33 = vset.pattern.permute.xlu0 0
    %34 = vperm.xlu0 %33, %v30
    %v35 = vpop.permute.xlu0 %34
    %vm36 = vcmp.eq.s32.totalorder %v32, %v35
    %v37 = vadd.s32 %v30, 16
    %38 = vset.pattern.permute.xlu0 0
    %39 = vperm.xlu0 %38, %v37
    %v40 = vpop.permute.xlu0 %39
    %vm41 = vcmp.eq.s32.totalorder %v32, %v40
    %vm42 = vmor %vm36, %vm41
    %v43 = vadd.s32 %v30, 32
    %44 = vset.pattern.permute.xlu0 0
    %45 = vperm.xlu0 %44, %v43
    %v46 = vpop.permute.xlu0 %45
    %vm47 = vcmp.eq.s32.totalorder %v32, %v46
    %vm48 = vmor %vm42, %vm47
    %v49 = vadd.s32 %v30, 48
    %50 = vset.pattern.permute.xlu0 0
    %51 = vperm.xlu0 %50, %v49
    %v52 = vpop.permute.xlu0 %51
    %vm53 = vcmp.eq.s32.totalorder %v32, %v52
    %vm54 = vmor %vm48, %vm53
    %v55 = vadd.s32 %v30, 64
    %56 = vset.pattern.permute.xlu0 0
    %57 = vperm.xlu0 %56, %v55
    %v58 = vpop.permute.xlu0 %57
    %vm59 = vcmp.eq.s32.totalorder %v32, %v58
    %vm60 = vmor %vm54, %vm59
    %v61 = vadd.s32 %v30, 80
    %62 = vset.pattern.permute.xlu0 0
    %63 = vperm.xlu0 %62, %v61
    %v64 = vpop.permute.xlu0 %63
    %vm65 = vcmp.eq.s32.totalorder %v32, %v64
    %vm66 = vmor %vm60, %vm65
    %v67 = vadd.s32 %v30, 96
    %68 = vset.pattern.permute.xlu0 0
    %69 = vperm.xlu0 %68, %v67
    %v70 = vpop.permute.xlu0 %69
    %vm71 = vcmp.eq.s32.totalorder %v32, %v70
    %vm72 = vmor %vm66, %vm71
    %v73 = vadd.s32 %v30, 112
    %74 = vset.pattern.permute.xlu0 0
    %75 = vperm.xlu0 %74, %v73
    %v76 = vpop.permute.xlu0 %75
    %vm77 = vcmp.eq.s32.totalorder %v32, %v76
    %vm78 = vmor %vm72, %vm77
    %v79 = vlaneseq
    %v80 = vshrl.u32 %v79, 7
    %v81 = vadd.s32 %v80, 8
    %v82 = vadd.s32 %v80, 16
    %v83 = vadd.s32 %v80, 24
    %v84 = vadd.s32 %v80, 32
    %v85 = vadd.s32 %v80, 40
    %v86 = vadd.s32 %v80, 48
    %v87 = vadd.s32 %v80, 56
    %v88 = vadd.s32 %v80, 64
    %v89 = vadd.s32 %v80, 72
    %v90 = vadd.s32 %v80, 80
    %v91 = vadd.s32 %v80, 88
    %v92 = vadd.s32 %v80, 96
    %v93 = vadd.s32 %v80, 104
    %v94 = vadd.s32 %v80, 112
    %v95 = vadd.s32 %v80, 120
    %v96 = vmul.u32 %v32, 16
    %vm97 = vcmp.ge.s32.totalorder %v80, %v96
    %vm98 = vcmp.ge.s32.totalorder %v81, %v96
    %vm99 = vcmp.ge.s32.totalorder %v82, %v96
    %vm100 = vcmp.ge.s32.totalorder %v83, %v96
    %vm101 = vcmp.ge.s32.totalorder %v84, %v96
    %vm102 = vcmp.ge.s32.totalorder %v85, %v96
    %vm103 = vcmp.ge.s32.totalorder %v86, %v96
    %vm104 = vcmp.ge.s32.totalorder %v87, %v96
    %vm105 = vcmp.ge.s32.totalorder %v88, %v96
    %vm106 = vcmp.ge.s32.totalorder %v89, %v96
    %vm107 = vcmp.ge.s32.totalorder %v90, %v96
    %vm108 = vcmp.ge.s32.totalorder %v91, %v96
    %vm109 = vcmp.ge.s32.totalorder %v92, %v96
    %vm110 = vcmp.ge.s32.totalorder %v93, %v96
    %vm111 = vcmp.ge.s32.totalorder %v94, %v96
    %vm112 = vcmp.ge.s32.totalorder %v95, %v96
    %v113 = vadd.s32 %v32, 1
    %v114 = vmul.u32 %v113, 16
    %vm115 = vcmp.lt.s32.totalorder %v80, %v114
    %vm116 = vcmp.lt.s32.totalorder %v81, %v114
    %vm117 = vcmp.lt.s32.totalorder %v82, %v114
    %vm118 = vcmp.lt.s32.totalorder %v83, %v114
    %vm119 = vcmp.lt.s32.totalorder %v84, %v114
    %vm120 = vcmp.lt.s32.totalorder %v85, %v114
    %vm121 = vcmp.lt.s32.totalorder %v86, %v114
    %vm122 = vcmp.lt.s32.totalorder %v87, %v114
    %vm123 = vcmp.lt.s32.totalorder %v88, %v114
    %vm124 = vcmp.lt.s32.totalorder %v89, %v114
    %vm125 = vcmp.lt.s32.totalorder %v90, %v114
    %vm126 = vcmp.lt.s32.totalorder %v91, %v114
    %vm127 = vcmp.lt.s32.totalorder %v92, %v114
    %vm128 = vcmp.lt.s32.totalorder %v93, %v114
    %vm129 = vcmp.lt.s32.totalorder %v94, %v114
    %vm130 = vcmp.lt.s32.totalorder %v95, %v114
    %vm131 = vmand %vm97, %vm115
    %vm132 = vmand %vm98, %vm116
    %vm133 = vmand %vm99, %vm117
    %vm134 = vmand %vm100, %vm118
    %vm135 = vmand %vm101, %vm119
    %vm136 = vmand %vm102, %vm120
    %vm137 = vmand %vm103, %vm121
    %vm138 = vmand %vm104, %vm122
    %vm139 = vmand %vm105, %vm123
    %vm140 = vmand %vm106, %vm124
    %vm141 = vmand %vm107, %vm125
    %vm142 = vmand %vm108, %vm126
    %vm143 = vmand %vm109, %vm127
    %vm144 = vmand %vm110, %vm128
    %vm145 = vmand %vm111, %vm129
    %vm146 = vmand %vm112, %vm130
    %v147 = vsel %vm131, 1, 0
    %v148 = vsel %vm132, 1, 0
    %v149 = vsel %vm133, 1, 0
    %v150 = vsel %vm134, 1, 0
    %v151 = vsel %vm135, 1, 0
    %v152 = vsel %vm136, 1, 0
    %v153 = vsel %vm137, 1, 0
    %v154 = vsel %vm138, 1, 0
    %v155 = vsel %vm139, 1, 0
    %v156 = vsel %vm140, 1, 0
    %v157 = vsel %vm141, 1, 0
    %v158 = vsel %vm142, 1, 0
    %v159 = vsel %vm143, 1, 0
    %v160 = vsel %vm144, 1, 0
    %v161 = vsel %vm145, 1, 0
    %v162 = vsel %vm146, 1, 0
    %v163 = vcvt.s32.f32 %v147
    %v164 = vcvt.s32.f32 %v148
    %v165 = vcvt.s32.f32 %v149
    %v166 = vcvt.s32.f32 %v150
    %v167 = vcvt.s32.f32 %v151
    %v168 = vcvt.s32.f32 %v152
    %v169 = vcvt.s32.f32 %v153
    %v170 = vcvt.s32.f32 %v154
    %v171 = vcvt.s32.f32 %v155
    %v172 = vcvt.s32.f32 %v156
    %v173 = vcvt.s32.f32 %v157
    %v174 = vcvt.s32.f32 %v158
    %v175 = vcvt.s32.f32 %v159
    %v176 = vcvt.s32.f32 %v160
    %v177 = vcvt.s32.f32 %v161
    %v178 = vcvt.s32.f32 %v162
    %v179 = vmul.u32 %v80, 16
    %vm180 = vcmp.ge.s32.totalorder %v32, %v179
    %v181 = vadd.s32 %v80, 1
    %v182 = vmul.u32 %v181, 16
    %vm183 = vcmp.lt.s32.totalorder %v32, %v182
    %vm184 = vmand %vm180, %vm183
    %v185 = vsel %vm184, 1, 0
    %v186 = vcvt.s32.f32 %v185
    %v187 = vsel %vm78, %v27, 0.0
    %188 = vmatprep.subr.mxu0 0.0
    %189 = vmatpush1.msra.mxu0 %v178
    %190 = vmatprep.subr.mxu0 0.0
    %191 = vmatpush1.msra.mxu0 %v177
    %192 = vmatprep.subr.mxu0 0.0
    %193 = vmatpush1.msra.mxu0 %v176
    %194 = vmatprep.subr.mxu0 0.0
    %195 = vmatpush1.msra.mxu0 %v175
    %196 = vmatprep.subr.mxu0 0.0
    %197 = vmatpush1.msra.mxu0 %v174
    %198 = vmatprep.subr.mxu0 0.0
    %199 = vmatpush1.msra.mxu0 %v173
    %200 = vmatprep.subr.mxu0 0.0
    %201 = vmatpush1.msra.mxu0 %v172
    %202 = vmatprep.subr.mxu0 0.0
    %203 = vmatpush1.msra.mxu0 %v171
    %204 = vmatprep.subr.mxu0 0.0
    %205 = vmatpush1.msra.mxu0 %v170
    %206 = vmatprep.subr.mxu0 0.0
    %207 = vmatpush1.msra.mxu0 %v169
    %208 = vmatprep.subr.mxu0 0.0
    %209 = vmatpush1.msra.mxu0 %v168
    %210 = vmatprep.subr.mxu0 0.0
    %211 = vmatpush1.msra.mxu0 %v167
    %212 = vmatprep.subr.mxu0 0.0
    %213 = vmatpush1.msra.mxu0 %v166
    %214 = vmatprep.subr.mxu0 0.0
    %215 = vmatpush1.msra.mxu0 %v165
    %216 = vmatprep.subr.mxu0 0.0
    %217 = vmatpush1.msra.mxu0 %v164
    %218 = vmatprep.subr.mxu0 0.0
    %219 = vmatpush1.msra.mxu0 %v163
    %220 = vmatprep.subr.mxu0 0.0
    %221 = vmatpush2.msra.mxu0 0.0
    %222 = vmatprep.subr.mxu0 0.0
    %223 = vmatpush2.msra.mxu0 0.0
    %224 = vmatprep.subr.mxu0 0.0
    %225 = vmatpush2.msra.mxu0 0.0
    %226 = vmatprep.subr.mxu0 0.0
    %227 = vmatpush2.msra.mxu0 0.0
    %228 = vmatprep.subr.mxu0 0.0
    %229 = vmatpush2.msra.mxu0 0.0
    %230 = vmatprep.subr.mxu0 0.0
    %231 = vmatpush2.msra.mxu0 0.0
    %232 = vmatprep.subr.mxu0 0.0
    %233 = vmatpush2.msra.mxu0 0.0
    %234 = vmatprep.subr.mxu0 0.0
    %235 = vmatpush2.msra.mxu0 0.0
    %236 = vmatprep.subr.mxu0 0.0
    %237 = vmatpush2.msra.mxu0 0.0
    %238 = vmatprep.subr.mxu0 0.0
    %239 = vmatpush2.msra.mxu0 0.0
    %240 = vmatprep.subr.mxu0 0.0
    %241 = vmatpush2.msra.mxu0 0.0
    %242 = vmatprep.subr.mxu0 0.0
    %243 = vmatpush2.msra.mxu0 0.0
    %244 = vmatprep.subr.mxu0 0.0
    %245 = vmatpush2.msra.mxu0 0.0
    %246 = vmatprep.subr.mxu0 0.0
    %247 = vmatpush2.msra.mxu0 0.0
    %248 = vmatprep.subr.mxu0 0.0
    %249 = vmatpush2.msra.mxu0 0.0
    %250 = vmatprep.subr.mxu0 0.0
    %251 = vmatpush2.msra.mxu0 0.0
    %252 = vmatprep.mubr.f32.mxu0 0.0
    %253 = vmatmul.mubr.f32.gmra.mxu0 %v187
    %v254 = vpop.f32.mrf.mxu0
    %v255 = vadd.f32 0.0, %v254
    %v256 = vpop.f32.mrf.mxu0
    %257 = vdwg.mxu0
    %vm258 = vcmask 64512
    %v260 = vsel %vm258, %v255, 0
    %262 = vmatprep.subr.mxu0 0.0
    %263 = vmatpush1.msra.mxu0 0.0
    %264 = vmatprep.subr.mxu0 0.0
    %265 = vmatpush1.msra.mxu0 0.0
    %266 = vmatprep.subr.mxu0 0.0
    %267 = vmatpush1.msra.mxu0 0.0
    %268 = vmatprep.subr.mxu0 0.0
    %269 = vmatpush1.msra.mxu0 0.0
    %270 = vmatprep.subr.mxu0 0.0
    %271 = vmatpush1.msra.mxu0 0.0
    %272 = vmatprep.subr.mxu0 0.0
    %273 = vmatpush1.msra.mxu0 0.0
    %274 = vmatprep.subr.mxu0 0.0
    %275 = vmatpush1.msra.mxu0 0.0
    %276 = vmatprep.subr.mxu0 0.0
    %277 = vmatpush1.msra.mxu0 0.0
    %278 = vmatprep.subr.mxu0 0.0
    %279 = vmatpush1.msra.mxu0 0.0
    %280 = vmatprep.subr.mxu0 0.0
    %281 = vmatpush1.msra.mxu0 0.0
    %282 = vmatprep.subr.mxu0 0.0
    %283 = vmatpush1.msra.mxu0 0.0
    %284 = vmatprep.subr.mxu0 0.0
    %285 = vmatpush1.msra.mxu0 0.0
    %286 = vmatprep.subr.mxu0 0.0
    %287 = vmatpush1.msra.mxu0 0.0
    %288 = vmatprep.subr.mxu0 0.0
    %289 = vmatpush1.msra.mxu0 0.0
    %290 = vmatprep.subr.mxu0 0.0
    %291 = vmatpush1.msra.mxu0 0.0
    %292 = vmatprep.subr.mxu0 0.0
    %293 = vmatpush1.msra.mxu0 %v186
    %294 = vmatprep.subr.mxu0 0.0
    %295 = vmatpush2.msra.mxu0 0.0
    %296 = vmatprep.subr.mxu0 0.0
    %297 = vmatpush2.msra.mxu0 0.0
    %298 = vmatprep.subr.mxu0 0.0
    %299 = vmatpush2.msra.mxu0 0.0
    %300 = vmatprep.subr.mxu0 0.0
    %301 = vmatpush2.msra.mxu0 0.0
    %302 = vmatprep.subr.mxu0 0.0
    %303 = vmatpush2.msra.mxu0 0.0
    %304 = vmatprep.subr.mxu0 0.0
    %305 = vmatpush2.msra.mxu0 0.0
    %306 = vmatprep.subr.mxu0 0.0
    %307 = vmatpush2.msra.mxu0 0.0
    %308 = vmatprep.subr.mxu0 0.0
    %309 = vmatpush2.msra.mxu0 0.0
    %310 = vmatprep.subr.mxu0 0.0
    %311 = vmatpush2.msra.mxu0 0.0
    %312 = vmatprep.subr.mxu0 0.0
    %313 = vmatpush2.msra.mxu0 0.0
    %314 = vmatprep.subr.mxu0 0.0
    %315 = vmatpush2.msra.mxu0 0.0
    %316 = vmatprep.subr.mxu0 0.0
    %317 = vmatpush2.msra.mxu0 0.0
    %318 = vmatprep.subr.mxu0 0.0
    %319 = vmatpush2.msra.mxu0 0.0
    %320 = vmatprep.subr.mxu0 0.0
    %321 = vmatpush2.msra.mxu0 0.0
    %322 = vmatprep.subr.mxu0 0.0
    %323 = vmatpush2.msra.mxu0 0.0
    %324 = vmatprep.subr.mxu0 0.0
    %325 = vmatpush2.msra.mxu0 0.0
    %326 = vmatprep.mubr.f32.mxu0 0.0
    %327 = vmatmul.mubr.f32.gmra.mxu0 %v260
    %v328 = vpop.f32.mrf.mxu0
    %v329 = vadd.f32 0.0, %v328
    %v330 = vpop.f32.mrf.mxu0
    %331 = vdwg.mxu0
    %v332 = vsub.f32 %v27, %v329
    %v333 = vadd.f32 %v332, 1.0
    %v334 = vmax.f32 %v333, 0.0
    %v336 = vsel %vm258, %v29, 0
    %338 = vmatprep.subr.mxu0 0.0
    %339 = vmatpush1.msra.mxu0 0.0
    %340 = vmatprep.subr.mxu0 0.0
    %341 = vmatpush1.msra.mxu0 0.0
    %342 = vmatprep.subr.mxu0 0.0
    %343 = vmatpush1.msra.mxu0 0.0
    %344 = vmatprep.subr.mxu0 0.0
    %345 = vmatpush1.msra.mxu0 0.0
    %346 = vmatprep.subr.mxu0 0.0
    %347 = vmatpush1.msra.mxu0 0.0
    %348 = vmatprep.subr.mxu0 0.0
    %349 = vmatpush1.msra.mxu0 0.0
    %350 = vmatprep.subr.mxu0 0.0
    %351 = vmatpush1.msra.mxu0 0.0
    %352 = vmatprep.subr.mxu0 0.0
    %353 = vmatpush1.msra.mxu0 0.0
    %354 = vmatprep.subr.mxu0 0.0
    %355 = vmatpush1.msra.mxu0 0.0
    %356 = vmatprep.subr.mxu0 0.0
    %357 = vmatpush1.msra.mxu0 0.0
    %358 = vmatprep.subr.mxu0 0.0
    %359 = vmatpush1.msra.mxu0 0.0
    %360 = vmatprep.subr.mxu0 0.0
    %361 = vmatpush1.msra.mxu0 0.0
    %362 = vmatprep.subr.mxu0 0.0
    %363 = vmatpush1.msra.mxu0 0.0
    %364 = vmatprep.subr.mxu0 0.0
    %365 = vmatpush1.msra.mxu0 0.0
    %366 = vmatprep.subr.mxu0 0.0
    %367 = vmatpush1.msra.mxu0 0.0
    %368 = vmatprep.subr.mxu0 0.0
    %369 = vmatpush1.msra.mxu0 %v186
    %370 = vmatprep.subr.mxu0 0.0
    %371 = vmatpush2.msra.mxu0 0.0
    %372 = vmatprep.subr.mxu0 0.0
    %373 = vmatpush2.msra.mxu0 0.0
    %374 = vmatprep.subr.mxu0 0.0
    %375 = vmatpush2.msra.mxu0 0.0
    %376 = vmatprep.subr.mxu0 0.0
    %377 = vmatpush2.msra.mxu0 0.0
    %378 = vmatprep.subr.mxu0 0.0
    %379 = vmatpush2.msra.mxu0 0.0
    %380 = vmatprep.subr.mxu0 0.0
    %381 = vmatpush2.msra.mxu0 0.0
    %382 = vmatprep.subr.mxu0 0.0
    %383 = vmatpush2.msra.mxu0 0.0
    %384 = vmatprep.subr.mxu0 0.0
    %385 = vmatpush2.msra.mxu0 0.0
    %386 = vmatprep.subr.mxu0 0.0
    %387 = vmatpush2.msra.mxu0 0.0
    %388 = vmatprep.subr.mxu0 0.0
    %389 = vmatpush2.msra.mxu0 0.0
    %390 = vmatprep.subr.mxu0 0.0
    %391 = vmatpush2.msra.mxu0 0.0
    %392 = vmatprep.subr.mxu0 0.0
    %393 = vmatpush2.msra.mxu0 0.0
    %394 = vmatprep.subr.mxu0 0.0
    %395 = vmatpush2.msra.mxu0 0.0
    %396 = vmatprep.subr.mxu0 0.0
    %397 = vmatpush2.msra.mxu0 0.0
    %398 = vmatprep.subr.mxu0 0.0
    %399 = vmatpush2.msra.mxu0 0.0
    %400 = vmatprep.subr.mxu0 0.0
    %401 = vmatpush2.msra.mxu0 0.0
    %402 = vmatprep.mubr.f32.mxu0 0.0
    %403 = vmatmul.mubr.f32.gmra.mxu0 %v336
    %v404 = vpop.f32.mrf.mxu0
    %v405 = vadd.f32 0.0, %v404
    %v406 = vpop.f32.mrf.mxu0
    %407 = vdwg.mxu0
    %v408 = vld [vmem:[#allocation2] sm:$0x1]
    %v409 = vmul.f32 %v334, %v405
    %410 = vadd.xlane.f32.xlu0 %v409
    %v411 = vpop.xlane.xlu0 %410
    %v412 = vrot.slane %v411, 4
    %v413 = vadd.f32 %v411, %v412
    %v414 = vrot.slane %v413, 2
    %v415 = vadd.f32 %v413, %v414
    %v416 = vrot.slane %v415, 1
    %v417 = vadd.f32 %v415, %v416
    %s418 = vtos %v417
    %v419 = vstv %s418
    %v420 = vadd.f32 %v408, %v419
    %vm421 = vcmask 0
    %422 = vst.msk [vmem:[#allocation2] sm:$0x1] %vm421, %v420
    %v423 = vld [vmem:[#allocation4] sm:$0x1]
    %v424 = vsel %vm258, %v29, 0.0
    %v425 = vrot.slane %v424, 4
    %v426 = vadd.f32 %v424, %v425
    %v427 = vrot.slane %v426, 2
    %v428 = vadd.f32 %v426, %v427
    %v429 = vrot.slane %v428, 1
    %v430 = vadd.f32 %v428, %v429
    %v431 = vadd.f32 %v423, %v430
    %vm432 = vcmask 57344
    %433 = vst.msk [vmem:[#allocation4] sm:$0x1] %vm432, %v431
    // Predicated region
    $region18: #{tpu_custom_call.1} parent=1 // pred_check
      _
    $region19: #{tpu_custom_call.1} parent=1 // pred_check_branch
      %435 = sbr.rel (0) target = $region21
    $region20: #{tpu_custom_call.1} parent=1 // pred_region
      %s437 = ssub.s32 16, 16
      %438 = vsyncadd [#allocation3], %s437
      %s440 = sshll.u32 [#allocation2], 4
      %s441 = int_to_ptr.vmem [resolvable:$true] %s440
      %443 = dma.vmem_to_hbm [thread:$0]  %s441, 16, %s3, [#allocation3]
    $region21: #{tpu_custom_call.1} parent=1 // pred_fallthru
      _
    // Predicated region
    $region22: #{tpu_custom_call.1} parent=1 // pred_check
      _
    $region23: #{tpu_custom_call.1} parent=1 // pred_check_branch
      %445 = sbr.rel (0) target = $region25
    $region24: #{tpu_custom_call.1} parent=1 // pred_region
      %s447 = ssub.s32 16, 16
      %448 = vsyncadd [#allocation5], %s447
      %s450 = sshll.u32 [#allocation4], 4
      %s451 = int_to_ptr.vmem [resolvable:$true] %s450
      %453 = dma.vmem_to_hbm [thread:$0]  %s451, 16, %s4, [#allocation5]
    $region25: #{tpu_custom_call.1} parent=1 // pred_fallthru
      _
    // Predicated region
    $region26: #{tpu_custom_call.1} parent=1 // pred_check
      _
    $region27: #{tpu_custom_call.1} parent=1 // pred_check_branch
      %455 = sbr.rel (0) target = $region29
    $region28: #{tpu_custom_call.1} parent=1 // pred_region
      %456 = dma.done [#allocation3], 16
    $region29: #{tpu_custom_call.1} parent=1 // pred_fallthru
      _
    // Predicated region
    $region30: #{tpu_custom_call.1} parent=1 // pred_check
      _
    $region31: #{tpu_custom_call.1} parent=1 // pred_check_branch
      %458 = sbr.rel (0) target = $region33
    $region32: #{tpu_custom_call.1} parent=1 // pred_region
      %459 = dma.done [#allocation5], 16
    $region33: #{tpu_custom_call.1} parent=1 // pred_fallthru
      _
    %460 = vsyncpa [#allocation3], 1
    %461 = vsyncpa [#allocation5], 1

</llo_original>
